<compile_context>
chip_gen: v5e
topology: v5e:2x2
jax: 0.10.0
libtpu: 0.0.40
codegen_flags: <defaults>
</compile_context>

<pallas_src>
import functools

import jax
import jax.numpy as jnp
from jax.experimental import pallas as pl
from jax.experimental.pallas import tpu as pltpu


# ----------------------------------------------------------------------------
# Packed-parameter layout (shared between wrapper and kernel; all static ints)
# ----------------------------------------------------------------------------
def _round_up8(n):
    return (n + 7) // 8 * 8


def _packed_layout(C1, C2, L2):
    """Static row offsets of each parameter inside the packed (R, 64) buffer."""
    r_conv1 = 0                      # rows 0..2: conv1 tap0, tap1, bias (lanes :C1)
    r_w2 = 8                         # rows r_w2 .. r_w2+2*C1-1: conv2 [tap0; tap1]
    r_b2 = r_w2 + 2 * C1             # conv2 bias
    r_fc1w = _round_up8(r_b2 + 1)    # fc1 weight, position-major rows (L2*C2, H)
    r_fc1b = r_fc1w + L2 * C2        # fc1 bias
    r_fc2w = r_fc1b + 1              # fc2 weight as a (1, H) row
    r_fc2b = r_fc2w + 1              # fc2 bias in column 0
    total = _round_up8(r_fc2b + 1)
    return r_conv1, r_w2, r_b2, r_fc1w, r_fc1b, r_fc2w, r_fc2b, total


# ----------------------------------------------------------------------------
# Pallas kernel: conv1+relu -> conv2+relu -> flatten -> fc1+relu -> fc2
# ----------------------------------------------------------------------------
def wine_cnn_kernel(x_ref, w_ref, out_ref, *, C1, C2, H):
    x = x_ref[...]                                   # (B, F) f32
    B, F = x.shape
    L1, L2 = F - 1, F - 2
    (r_conv1, r_w2, r_b2, r_fc1w, r_fc1b,
     r_fc2w, r_fc2b, _) = _packed_layout(C1, C2, L2)

    # ---- conv1 (1 -> C1, k=2) + ReLU, vectorized over all output positions ----
    # Stack the F input columns position-major along sublanes: row l*B + b = x[b, l].
    w1t0 = w_ref[r_conv1 + 0:r_conv1 + 1, :C1]       # (1, C1)  tap 0
    w1t1 = w_ref[r_conv1 + 1:r_conv1 + 2, :C1]       # (1, C1)  tap 1
    b1 = w_ref[r_conv1 + 2:r_conv1 + 3, :C1]         # (1, C1)
    xcols = jnp.concatenate([x[:, l:l + 1] for l in range(F)], axis=0)   # (F*B, 1)
    x0 = xcols[:L1 * B, :]                           # x[b, l]
    x1 = xcols[B:, :]                                # x[b, l+1]
    h1 = jnp.maximum(x0 * w1t0 + x1 * w1t1 + b1, 0.0)                    # (L1*B, C1)

    # dropout(p=0.3): identity at inference time.

    # ---- conv2 (C1 -> C2, k=2) + ReLU: single im2col matmul ----
    col = jnp.concatenate([h1[:L2 * B, :], h1[B:, :]], axis=1)           # (L2*B, 2*C1)
    W2 = w_ref[r_w2:r_w2 + 2 * C1, :C2]              # (2*C1, C2) = [tap0; tap1]
    b2 = w_ref[r_b2:r_b2 + 1, :C2]                   # (1, C2)
    h2 = jnp.maximum(
        jnp.dot(col, W2, preferred_element_type=jnp.float32) + b2, 0.0)  # (L2*B, C2)

    # ---- flatten (position-major lanes) + fc1 + ReLU: single matmul ----
    h2cat = jnp.concatenate(
        [h2[l * B:(l + 1) * B, :] for l in range(L2)], axis=1)           # (B, L2*C2)
    fc1w = w_ref[r_fc1w:r_fc1w + L2 * C2, :H]        # (L2*C2, H), position-major rows
    fc1b = w_ref[r_fc1b:r_fc1b + 1, :H]              # (1, H)
    f1 = jnp.maximum(
        jnp.dot(h2cat, fc1w, preferred_element_type=jnp.float32) + fc1b, 0.0)  # (B, H)

    # ---- fc2 (H -> 1): lane reduce instead of an N=1 MXU push ----
    fc2w = w_ref[r_fc2w:r_fc2w + 1, :H]              # (1, H)
    fc2b = w_ref[r_fc2b:r_fc2b + 1, 0:1]             # (1, 1)
    out_ref[...] = jnp.sum(f1 * fc2w, axis=1, keepdims=True) + fc2b      # (B, 1)


# ----------------------------------------------------------------------------
# One-time parameter prep (hoisted out of the forward hot path)
# ----------------------------------------------------------------------------
def prepare_params(params, input_features):
    """Pack PyTorch-shaped params into a single lane-padded (R, 64) f32 buffer."""
    conv1_w, conv1_b, conv2_w, conv2_b, fc1_w, fc1_b, fc2_w, fc2_b = params
    C1 = conv1_w.shape[0]            # 32
    C2 = conv2_w.shape[0]            # 64
    H = fc1_w.shape[0]               # 64
    L2 = input_features - 2
    W = max(C1, C2, H)               # packed lane width (64)
    (r_conv1, r_w2, r_b2, r_fc1w, r_fc1b,
     r_fc2w, r_fc2b, total) = _packed_layout(C1, C2, L2)

    def set_rows(buf, row, a):
        a = jnp.asarray(a, jnp.float32)
        return buf.at[row:row + a.shape[0], :a.shape[1]].set(a)

    buf = jnp.zeros((total, W), jnp.float32)
    buf = set_rows(buf, r_conv1, conv1_w[:, 0, :].T)                     # (2, C1) taps
    buf = set_rows(buf, r_conv1 + 2, conv1_b.reshape(1, C1))
    buf = set_rows(buf, r_w2,
                   jnp.concatenate([conv2_w[:, :, 0].T,
                                    conv2_w[:, :, 1].T], axis=0))        # (2*C1, C2)
    buf = set_rows(buf, r_b2, conv2_b.reshape(1, C2))
    # PyTorch flatten is channel-major: flat[c*L2 + l].  Re-order fc1 weight to
    # position-major blocks (row l*C2 + c) to match the kernel's h2cat layout.
    fc1w_r = jnp.transpose(fc1_w.reshape(H, C2, L2), (2, 1, 0)).reshape(L2 * C2, H)
    buf = set_rows(buf, r_fc1w, fc1w_r)
    buf = set_rows(buf, r_fc1b, fc1_b.reshape(1, H))
    buf = set_rows(buf, r_fc2w, fc2_w.reshape(1, H))
    buf = set_rows(buf, r_fc2b, fc2_b.reshape(1, 1))
    return buf, (C1, C2, H)


# ----------------------------------------------------------------------------
# Forward wrapper
# ----------------------------------------------------------------------------
def wine_cnn_forward(x_nchw, packed_w, dims):
    """x_nchw: (B, 1, F) float32; packed_w: buffer from prepare_params."""
    C1, C2, H = dims
    B, _, F = x_nchw.shape
    x = x_nchw[:, 0, :].astype(jnp.float32)          # (B, F)
    kernel = functools.partial(wine_cnn_kernel, C1=C1, C2=C2, H=H)
    return pl.pallas_call(
        kernel,
        out_shape=jax.ShapeDtypeStruct((B, 1), jnp.float32),
        in_specs=[pl.BlockSpec(memory_space=pltpu.MemorySpace.VMEM),
                  pl.BlockSpec(memory_space=pltpu.MemorySpace.VMEM)],
        out_specs=pl.BlockSpec(memory_space=pltpu.MemorySpace.VMEM),
    )(x, packed_w)


# ----------------------------------------------------------------------------
# Pure-JAX reference (PyTorch semantics, eval mode)
# ----------------------------------------------------------------------------
def reference_forward(x_nchw, params):
    conv1_w, conv1_b, conv2_w, conv2_b, fc1_w, fc1_b, fc2_w, fc2_b = params
    B = x_nchw.shape[0]
    x = x_nchw[:, 0, :]                                     # (B, F)
    xs = jnp.stack([x[:, :-1], x[:, 1:]], axis=-1)          # (B, L1, 2)
    h1 = jax.nn.relu(jnp.einsum('blk,ok->bol', xs, conv1_w[:, 0, :])
                     + conv1_b[None, :, None])              # (B, C1, L1)
    p2 = jnp.stack([h1[:, :, :-1], h1[:, :, 1:]], axis=-1)  # (B, C1, L2, 2)
    h2 = jax.nn.relu(jnp.einsum('bclk,ock->bol', p2, conv2_w)
                     + conv2_b[None, :, None])              # (B, C2, L2)
    flat = h2.reshape(B, -1)
    f1 = jax.nn.relu(flat @ fc1_w.T + fc1_b)
    return f1 @ fc2_w.T + fc2_b


# ----------------------------------------------------------------------------
# Main
# ----------------------------------------------------------------------------
if __name__ == "__main__":
    B = 8
    INPUT_FEATURES = 11              # wine-quality feature count
    L2 = INPUT_FEATURES - 2
    C1, C2, H = 32, 64, 64

    key = jax.random.PRNGKey(0)
    ks = jax.random.split(key, 9)
    params = (
        jax.random.normal(ks[0], (C1, 1, 2), jnp.float32) * 0.2,      # conv1.weight
        jax.random.normal(ks[1], (C1,), jnp.float32) * 0.1,           # conv1.bias
        jax.random.normal(ks[2], (C2, C1, 2), jnp.float32) * 0.1,     # conv2.weight
        jax.random.normal(ks[3], (C2,), jnp.float32) * 0.1,           # conv2.bias
        jax.random.normal(ks[4], (H, C2 * L2), jnp.float32) * 0.05,   # fc1.weight
        jax.random.normal(ks[5], (H,), jnp.float32) * 0.05,           # fc1.bias
        jax.random.normal(ks[6], (1, H), jnp.float32) * 0.1,          # fc2.weight
        jax.random.normal(ks[7], (1,), jnp.float32) * 0.1,            # fc2.bias
    )
    x = jax.random.normal(ks[8], (B, 1, INPUT_FEATURES), jnp.float32)

    # One-time parameter packing (hoisted out of the per-call hot path).
    packed_w, dims = prepare_params(params, INPUT_FEATURES)
    packed_w = jax.block_until_ready(packed_w)

    forward = jax.jit(wine_cnn_forward, static_argnums=(2,))
    out = forward(x, packed_w, dims)
    out = jax.block_until_ready(out)

    ref = reference_forward(x, params)
    assert out.shape == (B, 1), out.shape
    assert jnp.allclose(out, ref, atol=1e-4, rtol=1e-4), (out, ref)

    print("KERNEL_OK")
</pallas_src>

<mosaic_0001>
module attributes {stable_mosaic.version = 11 : i64} {
  func.func @wine_cnn_kernel(%arg0: memref<8x11xf32, #tpu.memory_space<vmem>>, %arg1: memref<664x64xf32, #tpu.memory_space<vmem>>, %arg2: memref<8x1xf32, #tpu.memory_space<vmem>>) attributes {dimension_semantics = [], scalar_prefetch = 0 : i64, scratch_operands = 0 : i64, tpu.core_type = #tpu.core_type<tc>} {
    %c0 = arith.constant 0 : index
    %c0_0 = arith.constant 0 : index
    %0 = vector.load %arg0[%c0, %c0_0] : memref<8x11xf32, #tpu.memory_space<vmem>>, vector<8x11xf32>
    %c0_1 = arith.constant 0 : index
    %c0_2 = arith.constant 0 : index
    %1 = vector.load %arg1[%c0_1, %c0_2] : memref<664x64xf32, #tpu.memory_space<vmem>>, vector<1x32xf32>
    %c1 = arith.constant 1 : index
    %c0_3 = arith.constant 0 : index
    %2 = vector.load %arg1[%c1, %c0_3] : memref<664x64xf32, #tpu.memory_space<vmem>>, vector<1x32xf32>
    %c2 = arith.constant 2 : index
    %c0_4 = arith.constant 0 : index
    %3 = vector.load %arg1[%c2, %c0_4] : memref<664x64xf32, #tpu.memory_space<vmem>>, vector<1x32xf32>
    %4 = vector.extract_strided_slice %0 {offsets = [0, 0], sizes = [8, 1], strides = [1, 1]} : vector<8x11xf32> to vector<8x1xf32>
    %5 = vector.extract_strided_slice %0 {offsets = [0, 1], sizes = [8, 1], strides = [1, 1]} : vector<8x11xf32> to vector<8x1xf32>
    %6 = vector.extract_strided_slice %0 {offsets = [0, 2], sizes = [8, 1], strides = [1, 1]} : vector<8x11xf32> to vector<8x1xf32>
    %7 = vector.extract_strided_slice %0 {offsets = [0, 3], sizes = [8, 1], strides = [1, 1]} : vector<8x11xf32> to vector<8x1xf32>
    %8 = vector.extract_strided_slice %0 {offsets = [0, 4], sizes = [8, 1], strides = [1, 1]} : vector<8x11xf32> to vector<8x1xf32>
    %9 = vector.extract_strided_slice %0 {offsets = [0, 5], sizes = [8, 1], strides = [1, 1]} : vector<8x11xf32> to vector<8x1xf32>
    %10 = vector.extract_strided_slice %0 {offsets = [0, 6], sizes = [8, 1], strides = [1, 1]} : vector<8x11xf32> to vector<8x1xf32>
    %11 = vector.extract_strided_slice %0 {offsets = [0, 7], sizes = [8, 1], strides = [1, 1]} : vector<8x11xf32> to vector<8x1xf32>
    %12 = vector.extract_strided_slice %0 {offsets = [0, 8], sizes = [8, 1], strides = [1, 1]} : vector<8x11xf32> to vector<8x1xf32>
    %13 = vector.extract_strided_slice %0 {offsets = [0, 9], sizes = [8, 1], strides = [1, 1]} : vector<8x11xf32> to vector<8x1xf32>
    %14 = vector.extract_strided_slice %0 {offsets = [0, 10], sizes = [8, 1], strides = [1, 1]} : vector<8x11xf32> to vector<8x1xf32>
    %15 = tpu.concatenate %4, %5, %6, %7, %8, %9, %10, %11, %12, %13, %14 in 0 : vector<8x1xf32>, vector<8x1xf32>, vector<8x1xf32>, vector<8x1xf32>, vector<8x1xf32>, vector<8x1xf32>, vector<8x1xf32>, vector<8x1xf32>, vector<8x1xf32>, vector<8x1xf32>, vector<8x1xf32> -> vector<88x1xf32>
    %16 = vector.extract_strided_slice %15 {offsets = [0, 0], sizes = [80, 1], strides = [1, 1]} : vector<88x1xf32> to vector<80x1xf32>
    %17 = vector.extract_strided_slice %15 {offsets = [8, 0], sizes = [80, 1], strides = [1, 1]} : vector<88x1xf32> to vector<80x1xf32>
    %18 = vector.broadcast %16 : vector<80x1xf32> to vector<80x32xf32>
    %19 = vector.broadcast %1 : vector<1x32xf32> to vector<80x32xf32>
    %20 = arith.mulf %18, %19 : vector<80x32xf32>
    %21 = vector.broadcast %17 : vector<80x1xf32> to vector<80x32xf32>
    %22 = vector.broadcast %2 : vector<1x32xf32> to vector<80x32xf32>
    %23 = arith.mulf %21, %22 : vector<80x32xf32>
    %24 = arith.addf %20, %23 : vector<80x32xf32>
    %25 = vector.broadcast %3 : vector<1x32xf32> to vector<80x32xf32>
    %26 = arith.addf %24, %25 : vector<80x32xf32>
    %cst = arith.constant 0.000000e+00 : f32
    %27 = vector.broadcast %cst : f32 to vector<80x32xf32>
    %28 = arith.maximumf %26, %27 : vector<80x32xf32>
    %29 = vector.extract_strided_slice %28 {offsets = [0, 0], sizes = [72, 32], strides = [1, 1]} : vector<80x32xf32> to vector<72x32xf32>
    %30 = vector.extract_strided_slice %28 {offsets = [8, 0], sizes = [72, 32], strides = [1, 1]} : vector<80x32xf32> to vector<72x32xf32>
    %31 = tpu.concatenate %29, %30 in 1 : vector<72x32xf32>, vector<72x32xf32> -> vector<72x64xf32>
    %c8 = arith.constant 8 : index
    %c0_5 = arith.constant 0 : index
    %32 = vector.load %arg1[%c8, %c0_5] : memref<664x64xf32, #tpu.memory_space<vmem>>, vector<64x64xf32>
    %c72 = arith.constant 72 : index
    %c0_6 = arith.constant 0 : index
    %33 = vector.load %arg1[%c72, %c0_6] : memref<664x64xf32, #tpu.memory_space<vmem>>, vector<1x64xf32>
    %cst_7 = arith.constant dense<0.000000e+00> : vector<72x64xf32>
    %34 = tpu.matmul %31, %32, %cst_7 {dimension_numbers = #tpu.dot_dimension_numbers<[1], [0], [0], [1], [0, 0, 1, 1], [], []>} : vector<72x64xf32>, vector<64x64xf32>, vector<72x64xf32> -> vector<72x64xf32>
    %35 = vector.broadcast %33 : vector<1x64xf32> to vector<72x64xf32>
    %36 = arith.addf %34, %35 : vector<72x64xf32>
    %cst_8 = arith.constant 0.000000e+00 : f32
    %37 = vector.broadcast %cst_8 : f32 to vector<72x64xf32>
    %38 = arith.maximumf %36, %37 : vector<72x64xf32>
    %39 = vector.extract_strided_slice %38 {offsets = [0, 0], sizes = [8, 64], strides = [1, 1]} : vector<72x64xf32> to vector<8x64xf32>
    %40 = vector.extract_strided_slice %38 {offsets = [8, 0], sizes = [8, 64], strides = [1, 1]} : vector<72x64xf32> to vector<8x64xf32>
    %41 = vector.extract_strided_slice %38 {offsets = [16, 0], sizes = [8, 64], strides = [1, 1]} : vector<72x64xf32> to vector<8x64xf32>
    %42 = vector.extract_strided_slice %38 {offsets = [24, 0], sizes = [8, 64], strides = [1, 1]} : vector<72x64xf32> to vector<8x64xf32>
    %43 = vector.extract_strided_slice %38 {offsets = [32, 0], sizes = [8, 64], strides = [1, 1]} : vector<72x64xf32> to vector<8x64xf32>
    %44 = vector.extract_strided_slice %38 {offsets = [40, 0], sizes = [8, 64], strides = [1, 1]} : vector<72x64xf32> to vector<8x64xf32>
    %45 = vector.extract_strided_slice %38 {offsets = [48, 0], sizes = [8, 64], strides = [1, 1]} : vector<72x64xf32> to vector<8x64xf32>
    %46 = vector.extract_strided_slice %38 {offsets = [56, 0], sizes = [8, 64], strides = [1, 1]} : vector<72x64xf32> to vector<8x64xf32>
    %47 = vector.extract_strided_slice %38 {offsets = [64, 0], sizes = [8, 64], strides = [1, 1]} : vector<72x64xf32> to vector<8x64xf32>
    %48 = tpu.concatenate %39, %40, %41, %42, %43, %44, %45, %46, %47 in 1 : vector<8x64xf32>, vector<8x64xf32>, vector<8x64xf32>, vector<8x64xf32>, vector<8x64xf32>, vector<8x64xf32>, vector<8x64xf32>, vector<8x64xf32>, vector<8x64xf32> -> vector<8x576xf32>
    %c80 = arith.constant 80 : index
    %c0_9 = arith.constant 0 : index
    %49 = vector.load %arg1[%c80, %c0_9] : memref<664x64xf32, #tpu.memory_space<vmem>>, vector<576x64xf32>
    %c656 = arith.constant 656 : index
    %c0_10 = arith.constant 0 : index
    %50 = vector.load %arg1[%c656, %c0_10] : memref<664x64xf32, #tpu.memory_space<vmem>>, vector<1x64xf32>
    %cst_11 = arith.constant dense<0.000000e+00> : vector<8x64xf32>
    %51 = tpu.matmul %48, %49, %cst_11 {dimension_numbers = #tpu.dot_dimension_numbers<[1], [0], [0], [1], [0, 0, 1, 1], [], []>} : vector<8x576xf32>, vector<576x64xf32>, vector<8x64xf32> -> vector<8x64xf32>
    %52 = vector.broadcast %50 : vector<1x64xf32> to vector<8x64xf32>
    %53 = arith.addf %51, %52 : vector<8x64xf32>
    %cst_12 = arith.constant 0.000000e+00 : f32
    %54 = vector.broadcast %cst_12 : f32 to vector<8x64xf32>
    %55 = arith.maximumf %53, %54 : vector<8x64xf32>
    %c657 = arith.constant 657 : index
    %c0_13 = arith.constant 0 : index
    %56 = vector.load %arg1[%c657, %c0_13] : memref<664x64xf32, #tpu.memory_space<vmem>>, vector<1x64xf32>
    %c658 = arith.constant 658 : index
    %c0_14 = arith.constant 0 : index
    %57 = vector.load %arg1[%c658, %c0_14] : memref<664x64xf32, #tpu.memory_space<vmem>>, vector<1x1xf32>
    %58 = vector.broadcast %56 : vector<1x64xf32> to vector<8x64xf32>
    %59 = arith.mulf %55, %58 : vector<8x64xf32>
    %cst_15 = arith.constant dense<0.000000e+00> : vector<8xf32>
    %60 = vector.multi_reduction <add>, %59, %cst_15 [1] : vector<8x64xf32> to vector<8xf32>
    %61 = vector.shape_cast %60 : vector<8xf32> to vector<8x1xf32>
    %62 = vector.broadcast %57 : vector<1x1xf32> to vector<8x1xf32>
    %63 = arith.addf %61, %62 : vector<8x1xf32>
    %c0_16 = arith.constant 0 : index
    %c0_17 = arith.constant 0 : index
    %64 = vector.load %arg2[%c0_16, %c0_17] : memref<8x1xf32, #tpu.memory_space<vmem>>, vector<8x1xf32>
    tpu.vector_store %arg2[%c0_16, %c0_17], %63 {strides = array<i32>} : memref<8x1xf32, #tpu.memory_space<vmem>>, vector<8x1xf32>,
    return
  }
}

</mosaic_0001>

<llo_original>
// kernel: wine_cnn_forward.1
$region0: #{wine_cnn_forward.1}
  #allocation0 [shape = 'u32[]', space=smem, size = 0x4, offset = 0x4, fixed_abs, tag = 'smem constant byte address 0x4 - core index']
  #allocation1 [shape = 'u32[72,128]{1,0:T(1,128)}', space=vmem, size = 0x9000, scoped, tag = 'internal scratch']
  %s0 = inlined_call_operand.vmem [shape: f32[8,11], index: 0, kind: input, shape index: {}]
  %s1 = inlined_call_operand.vmem [shape: f32[664,64], index: 1, kind: input, shape index: {}]
  %s2 = inlined_call_operand.vmem [shape: f32[8,1], index: 2, kind: output, shape index: {}]
  %s3 = sld [smem:[#allocation0]]
  $region18: #{wine_cnn_forward.1} parent=0
    _
  %s5 = ssub.s32 1, %s3
  %s6 = scalar_select 0, %s5, %s3
  // Predicated region
  $region2: #{wine_cnn_forward.1} parent=0 // pred_check
    _
  $region3: #{wine_cnn_forward.1} parent=0 // pred_check_branch
    %8 = sbr.rel (0) target = $region5
  $region4: #{wine_cnn_forward.1} parent=0 // pred_region
    _
  $region5: #{wine_cnn_forward.1} parent=0 // pred_fallthru
    _
  // Predicated region
  $region6: #{wine_cnn_forward.1} parent=0 // pred_check
    _
  $region7: #{wine_cnn_forward.1} parent=0 // pred_check_branch
    %10 = sbr.rel (0) target = $region9
  $region8: #{wine_cnn_forward.1} parent=0 // pred_region
    _
  $region9: #{wine_cnn_forward.1} parent=0 // pred_fallthru
    _
  %v11 = vld [vmem:[%s0] sm:$0xff]
  %v12 = vld [vmem:[%s1] sm:$0x1]
  %v13 = vld [vmem:[%s1 + $0x1] sm:$0x1]
  %v14 = vld [vmem:[%s1 + $0x2] sm:$0x1]
  %16 = vrot.lane.b32.xlu0 %v11, 127
  %v17 = vpop.permute.xlu0 %16
  %18 = vrot.lane.b32.xlu0 %v11, 126
  %v19 = vpop.permute.xlu0 %18
  %20 = vrot.lane.b32.xlu0 %v11, 125
  %v21 = vpop.permute.xlu0 %20
  %22 = vrot.lane.b32.xlu0 %v11, 124
  %v23 = vpop.permute.xlu0 %22
  %24 = vrot.lane.b32.xlu0 %v11, 123
  %v25 = vpop.permute.xlu0 %24
  %26 = vrot.lane.b32.xlu0 %v11, 122
  %v27 = vpop.permute.xlu0 %26
  %28 = vrot.lane.b32.xlu0 %v11, 121
  %v29 = vpop.permute.xlu0 %28
  %30 = vrot.lane.b32.xlu0 %v11, 120
  %v31 = vpop.permute.xlu0 %30
  %32 = vrot.lane.b32.xlu0 %v11, 119
  %v33 = vpop.permute.xlu0 %32
  %34 = vrot.lane.b32.xlu0 %v11, 118
  %v35 = vpop.permute.xlu0 %34
  %36 = vset.pattern.permute.xlu0 0
  %37 = vperm.xlu0 %36, %v11
  %v38 = vpop.permute.xlu0 %37
  %40 = vset.pattern.permute.xlu0 0
  %41 = vperm.xlu0 %40, %v17
  %v42 = vpop.permute.xlu0 %41
  %44 = vset.pattern.permute.xlu0 0
  %45 = vperm.xlu0 %44, %v19
  %v46 = vpop.permute.xlu0 %45
  %48 = vset.pattern.permute.xlu0 0
  %49 = vperm.xlu0 %48, %v21
  %v50 = vpop.permute.xlu0 %49
  %52 = vset.pattern.permute.xlu0 0
  %53 = vperm.xlu0 %52, %v23
  %v54 = vpop.permute.xlu0 %53
  %56 = vset.pattern.permute.xlu0 0
  %57 = vperm.xlu0 %56, %v25
  %v58 = vpop.permute.xlu0 %57
  %60 = vset.pattern.permute.xlu0 0
  %61 = vperm.xlu0 %60, %v27
  %v62 = vpop.permute.xlu0 %61
  %64 = vset.pattern.permute.xlu0 0
  %65 = vperm.xlu0 %64, %v29
  %v66 = vpop.permute.xlu0 %65
  %68 = vset.pattern.permute.xlu0 0
  %69 = vperm.xlu0 %68, %v31
  %v70 = vpop.permute.xlu0 %69
  %72 = vset.pattern.permute.xlu0 0
  %73 = vperm.xlu0 %72, %v33
  %v74 = vpop.permute.xlu0 %73
  %v76 = vperm.slane %v12, 0
  %v77 = vmul.f32 %v38, %v76
  %v78 = vmul.f32 %v42, %v76
  %v79 = vmul.f32 %v46, %v76
  %v80 = vmul.f32 %v50, %v76
  %v81 = vmul.f32 %v54, %v76
  %v82 = vmul.f32 %v58, %v76
  %v83 = vmul.f32 %v62, %v76
  %v84 = vmul.f32 %v66, %v76
  %v85 = vmul.f32 %v70, %v76
  %v86 = vmul.f32 %v74, %v76
  %87 = vset.pattern.permute.xlu0 0
  %88 = vperm.xlu0 %87, %v35
  %v89 = vpop.permute.xlu0 %88
  %v91 = vperm.slane %v13, 0
  %v92 = vmul.f32 %v42, %v91
  %v93 = vmul.f32 %v46, %v91
  %v94 = vmul.f32 %v50, %v91
  %v95 = vmul.f32 %v54, %v91
  %v96 = vmul.f32 %v58, %v91
  %v97 = vmul.f32 %v62, %v91
  %v98 = vmul.f32 %v66, %v91
  %v99 = vmul.f32 %v70, %v91
  %v100 = vmul.f32 %v74, %v91
  %v101 = vmul.f32 %v89, %v91
  %v102 = vadd.f32 %v77, %v92
  %v103 = vadd.f32 %v78, %v93
  %v104 = vadd.f32 %v79, %v94
  %v105 = vadd.f32 %v80, %v95
  %v106 = vadd.f32 %v81, %v96
  %v107 = vadd.f32 %v82, %v97
  %v108 = vadd.f32 %v83, %v98
  %v109 = vadd.f32 %v84, %v99
  %v110 = vadd.f32 %v85, %v100
  %v111 = vadd.f32 %v86, %v101
  %v112 = vperm.slane %v14, 0
  %v113 = vadd.f32 %v102, %v112
  %v114 = vadd.f32 %v103, %v112
  %v115 = vadd.f32 %v104, %v112
  %v116 = vadd.f32 %v105, %v112
  %v117 = vadd.f32 %v106, %v112
  %v118 = vadd.f32 %v107, %v112
  %v119 = vadd.f32 %v108, %v112
  %v120 = vadd.f32 %v109, %v112
  %v121 = vadd.f32 %v110, %v112
  %v122 = vadd.f32 %v111, %v112
  %v123 = vmax.f32 %v113, 0.0
  %v124 = vmax.f32 %v114, 0.0
  %v125 = vmax.f32 %v115, 0.0
  %v126 = vmax.f32 %v116, 0.0
  %v127 = vmax.f32 %v117, 0.0
  %v128 = vmax.f32 %v118, 0.0
  %v129 = vmax.f32 %v119, 0.0
  %v130 = vmax.f32 %v120, 0.0
  %v131 = vmax.f32 %v121, 0.0
  %v132 = vmax.f32 %v122, 0.0
  %142 = vrot.lane.b32.xlu0 %v124, 32
  %v143 = vpop.permute.xlu0 %142
  %144 = vrot.lane.b32.xlu0 %v125, 32
  %v145 = vpop.permute.xlu0 %144
  %146 = vrot.lane.b32.xlu0 %v126, 32
  %v147 = vpop.permute.xlu0 %146
  %148 = vrot.lane.b32.xlu0 %v127, 32
  %v149 = vpop.permute.xlu0 %148
  %150 = vrot.lane.b32.xlu0 %v128, 32
  %v151 = vpop.permute.xlu0 %150
  %152 = vrot.lane.b32.xlu0 %v129, 32
  %v153 = vpop.permute.xlu0 %152
  %154 = vrot.lane.b32.xlu0 %v130, 32
  %v155 = vpop.permute.xlu0 %154
  %156 = vrot.lane.b32.xlu0 %v131, 32
  %v157 = vpop.permute.xlu0 %156
  %158 = vrot.lane.b32.xlu0 %v132, 32
  %v159 = vpop.permute.xlu0 %158
  %vm169 = vcmask 261120
  %v170 = vsel %vm169, %v123, %v143
  %v171 = vsel %vm169, %v124, %v145
  %v172 = vsel %vm169, %v125, %v147
  %v173 = vsel %vm169, %v126, %v149
  %v174 = vsel %vm169, %v127, %v151
  %v175 = vsel %vm169, %v128, %v153
  %v176 = vsel %vm169, %v129, %v155
  %v177 = vsel %vm169, %v130, %v157
  %v178 = vsel %vm169, %v131, %v159
  %v179 = vld [vmem:[%s1 + $0x8] sm:$0xff]
  %v180 = vld [vmem:[%s1 + $0x10] sm:$0xff]
  %v181 = vld [vmem:[%s1 + $0x18] sm:$0xff]
  %v182 = vld [vmem:[%s1 + $0x20] sm:$0xff]
  %v183 = vld [vmem:[%s1 + $0x28] sm:$0xff]
  %v184 = vld [vmem:[%s1 + $0x30] sm:$0xff]
  %v185 = vld [vmem:[%s1 + $0x38] sm:$0xff]
  %v186 = vld [vmem:[%s1 + $0x40] sm:$0xff]
  %v187 = vld [vmem:[%s1 + $0x48] sm:$0x1]
  %v188 = vperm.slane %v187, 0
  %vm189 = vcmask 523264
  %v191 = vsel %vm189, %v170, 0
  %v194 = vsel %vm189, %v171, 0
  %v197 = vsel %vm189, %v172, 0
  %v200 = vsel %vm189, %v173, 0
  %v203 = vsel %vm189, %v174, 0
  %v206 = vsel %vm189, %v175, 0
  %v209 = vsel %vm189, %v176, 0
  %v212 = vsel %vm189, %v177, 0
  %v215 = vsel %vm189, %v178, 0
  %217 = vmatpush.msra.mxu0 0.0
  %218 = vmatpush.msra.mxu0 0.0
  %219 = vmatpush.msra.mxu0 0.0
  %220 = vmatpush.msra.mxu0 0.0
  %221 = vmatpush.msra.mxu0 0.0
  %222 = vmatpush.msra.mxu0 0.0
  %223 = vmatpush.msra.mxu0 0.0
  %224 = vmatpush.msra.mxu0 0.0
  %225 = vmatpush.msra.mxu0 %v186
  %226 = vmatpush.msra.mxu0 %v185
  %227 = vmatpush.msra.mxu0 %v184
  %228 = vmatpush.msra.mxu0 %v183
  %229 = vmatpush.msra.mxu0 %v182
  %230 = vmatpush.msra.mxu0 %v181
  %231 = vmatpush.msra.mxu0 %v180
  %232 = vmatpush.msra.mxu0 %v179
  %233 = vmatmul.f32.gmra.mxu0 %v191
  %v234 = vpop.f32.mrf.mxu0
  %v235 = vadd.f32 %v188, %v234
  %236 = vmatmul.f32.gmra.mxu0 %v194
  %v237 = vpop.f32.mrf.mxu0
  %v238 = vadd.f32 %v188, %v237
  %239 = vmatmul.f32.gmra.mxu0 %v197
  %v240 = vpop.f32.mrf.mxu0
  %v241 = vadd.f32 %v188, %v240
  %242 = vmatmul.f32.gmra.mxu0 %v200
  %v243 = vpop.f32.mrf.mxu0
  %v244 = vadd.f32 %v188, %v243
  %245 = vmatmul.f32.gmra.mxu0 %v203
  %v246 = vpop.f32.mrf.mxu0
  %v247 = vadd.f32 %v188, %v246
  %248 = vmatmul.f32.gmra.mxu0 %v206
  %v249 = vpop.f32.mrf.mxu0
  %v250 = vadd.f32 %v188, %v249
  %251 = vmatmul.f32.gmra.mxu0 %v209
  %v252 = vpop.f32.mrf.mxu0
  %v253 = vadd.f32 %v188, %v252
  %254 = vmatmul.f32.gmra.mxu0 %v212
  %v255 = vpop.f32.mrf.mxu0
  %v256 = vadd.f32 %v188, %v255
  %257 = vmatmul.f32.gmra.mxu0 %v215
  %v258 = vpop.f32.mrf.mxu0
  %v259 = vadd.f32 %v188, %v258
  %260 = vdwg.mxu0
  %v261 = vmax.f32 %v235, 0.0
  %v262 = vmax.f32 %v238, 0.0
  %v263 = vmax.f32 %v241, 0.0
  %v264 = vmax.f32 %v244, 0.0
  %v265 = vmax.f32 %v247, 0.0
  %v266 = vmax.f32 %v250, 0.0
  %v267 = vmax.f32 %v253, 0.0
  %v268 = vmax.f32 %v256, 0.0
  %v269 = vmax.f32 %v259, 0.0
  %271 = vrot.lane.b32.xlu0 %v262, 64
  %v272 = vpop.permute.xlu0 %271
  %275 = vrot.lane.b32.xlu0 %v264, 64
  %v276 = vpop.permute.xlu0 %275
  %279 = vrot.lane.b32.xlu0 %v266, 64
  %v280 = vpop.permute.xlu0 %279
  %283 = vrot.lane.b32.xlu0 %v268, 64
  %v284 = vpop.permute.xlu0 %283
  %v286 = vsel %vm189, %v261, %v272
  %v287 = vsel %vm189, %v263, %v276
  %v288 = vsel %vm189, %v265, %v280
  %v289 = vsel %vm189, %v267, %v284
  %v290 = vld [vmem:[%s1 + $0x50] sm:$0xff]
  %v291 = vld [vmem:[%s1 + $0x58] sm:$0xff]
  %v292 = vld [vmem:[%s1 + $0x60] sm:$0xff]
  %v293 = vld [vmem:[%s1 + $0x68] sm:$0xff]
  %v294 = vld [vmem:[%s1 + $0x70] sm:$0xff]
  %v295 = vld [vmem:[%s1 + $0x78] sm:$0xff]
  %v296 = vld [vmem:[%s1 + $0x80] sm:$0xff]
  %v297 = vld [vmem:[%s1 + $0x88] sm:$0xff]
  %v298 = vld [vmem:[%s1 + $0x90] sm:$0xff]
  %v299 = vld [vmem:[%s1 + $0x98] sm:$0xff]
  %v300 = vld [vmem:[%s1 + $0xa0] sm:$0xff]
  %v301 = vld [vmem:[%s1 + $0xa8] sm:$0xff]
  %v302 = vld [vmem:[%s1 + $0xb0] sm:$0xff]
  %v303 = vld [vmem:[%s1 + $0xb8] sm:$0xff]
  %v304 = vld [vmem:[%s1 + $0xc0] sm:$0xff]
  %v305 = vld [vmem:[%s1 + $0xc8] sm:$0xff]
  %v306 = vld [vmem:[%s1 + $0xd0] sm:$0xff]
  %v307 = vld [vmem:[%s1 + $0xd8] sm:$0xff]
  %v308 = vld [vmem:[%s1 + $0xe0] sm:$0xff]
  %v309 = vld [vmem:[%s1 + $0xe8] sm:$0xff]
  %v310 = vld [vmem:[%s1 + $0xf0] sm:$0xff]
  %v311 = vld [vmem:[%s1 + $0xf8] sm:$0xff]
  %v312 = vld [vmem:[%s1 + $0x100] sm:$0xff]
  %v313 = vld [vmem:[%s1 + $0x108] sm:$0xff]
  %v314 = vld [vmem:[%s1 + $0x110] sm:$0xff]
  %v315 = vld [vmem:[%s1 + $0x118] sm:$0xff]
  %v316 = vld [vmem:[%s1 + $0x120] sm:$0xff]
  %v317 = vld [vmem:[%s1 + $0x128] sm:$0xff]
  %v318 = vld [vmem:[%s1 + $0x130] sm:$0xff]
  %v319 = vld [vmem:[%s1 + $0x138] sm:$0xff]
  %v320 = vld [vmem:[%s1 + $0x140] sm:$0xff]
  %v321 = vld [vmem:[%s1 + $0x148] sm:$0xff]
  %v322 = vld [vmem:[%s1 + $0x150] sm:$0xff]
  %v323 = vld [vmem:[%s1 + $0x158] sm:$0xff]
  %v324 = vld [vmem:[%s1 + $0x160] sm:$0xff]
  %v325 = vld [vmem:[%s1 + $0x168] sm:$0xff]
  %v326 = vld [vmem:[%s1 + $0x170] sm:$0xff]
  %v327 = vld [vmem:[%s1 + $0x178] sm:$0xff]
  %v328 = vld [vmem:[%s1 + $0x180] sm:$0xff]
  %v329 = vld [vmem:[%s1 + $0x188] sm:$0xff]
  %v330 = vld [vmem:[%s1 + $0x190] sm:$0xff]
  %v331 = vld [vmem:[%s1 + $0x198] sm:$0xff]
  %v332 = vld [vmem:[%s1 + $0x1a0] sm:$0xff]
  %v333 = vld [vmem:[%s1 + $0x1a8] sm:$0xff]
  %v334 = vld [vmem:[%s1 + $0x1b0] sm:$0xff]
  %v335 = vld [vmem:[%s1 + $0x1b8] sm:$0xff]
  %v336 = vld [vmem:[%s1 + $0x1c0] sm:$0xff]
  %v337 = vld [vmem:[%s1 + $0x1c8] sm:$0xff]
  %v338 = vld [vmem:[%s1 + $0x1d0] sm:$0xff]
  %v339 = vld [vmem:[%s1 + $0x1d8] sm:$0xff]
  %v340 = vld [vmem:[%s1 + $0x1e0] sm:$0xff]
  %v341 = vld [vmem:[%s1 + $0x1e8] sm:$0xff]
  %v342 = vld [vmem:[%s1 + $0x1f0] sm:$0xff]
  %v343 = vld [vmem:[%s1 + $0x1f8] sm:$0xff]
  %v344 = vld [vmem:[%s1 + $0x200] sm:$0xff]
  %v345 = vld [vmem:[%s1 + $0x208] sm:$0xff]
  %v346 = vld [vmem:[%s1 + $0x210] sm:$0xff]
  %v347 = vld [vmem:[%s1 + $0x218] sm:$0xff]
  %v348 = vld [vmem:[%s1 + $0x220] sm:$0xff]
  %v349 = vld [vmem:[%s1 + $0x228] sm:$0xff]
  %v350 = vld [vmem:[%s1 + $0x230] sm:$0xff]
  %v351 = vld [vmem:[%s1 + $0x238] sm:$0xff]
  %v352 = vld [vmem:[%s1 + $0x240] sm:$0xff]
  %v353 = vld [vmem:[%s1 + $0x248] sm:$0xff]
  %v354 = vld [vmem:[%s1 + $0x250] sm:$0xff]
  %v355 = vld [vmem:[%s1 + $0x258] sm:$0xff]
  %v356 = vld [vmem:[%s1 + $0x260] sm:$0xff]
  %v357 = vld [vmem:[%s1 + $0x268] sm:$0xff]
  %v358 = vld [vmem:[%s1 + $0x270] sm:$0xff]
  %v359 = vld [vmem:[%s1 + $0x278] sm:$0xff]
  %v360 = vld [vmem:[%s1 + $0x280] sm:$0xff]
  %v361 = vld [vmem:[%s1 + $0x288] sm:$0xff]
  %v362 = vld [vmem:[%s1 + $0x290] sm:$0x1]
  %v363 = vperm.slane %v362, 0
  %v365 = vsel %vm189, %v269, 0
  %367 = vmatpush.msra.mxu0 %v305
  %368 = vmatpush.msra.mxu0 %v304
  %369 = vmatpush.msra.mxu0 %v303
  %370 = vmatpush.msra.mxu0 %v302
  %371 = vmatpush.msra.mxu0 %v301
  %372 = vmatpush.msra.mxu0 %v300
  %373 = vmatpush.msra.mxu0 %v299
  %374 = vmatpush.msra.mxu0 %v298
  %375 = vmatpush.msra.mxu0 %v297
  %376 = vmatpush.msra.mxu0 %v296
  %377 = vmatpush.msra.mxu0 %v295
  %378 = vmatpush.msra.mxu0 %v294
  %379 = vmatpush.msra.mxu0 %v293
  %380 = vmatpush.msra.mxu0 %v292
  %381 = vmatpush.msra.mxu0 %v291
  %382 = vmatpush.msra.mxu0 %v290
  %383 = vmatmul.f32.gmra.mxu0 %v286
  %v384 = vpop.f32.mrf.mxu0
  %v385 = vadd.f32 %v363, %v384
  %386 = vdwg.mxu0
  %387 = vmatpush.msra.mxu0 %v321
  %388 = vmatpush.msra.mxu0 %v320
  %389 = vmatpush.msra.mxu0 %v319
  %390 = vmatpush.msra.mxu0 %v318
  %391 = vmatpush.msra.mxu0 %v317
  %392 = vmatpush.msra.mxu0 %v316
  %393 = vmatpush.msra.mxu0 %v315
  %394 = vmatpush.msra.mxu0 %v314
  %395 = vmatpush.msra.mxu0 %v313
  %396 = vmatpush.msra.mxu0 %v312
  %397 = vmatpush.msra.mxu0 %v311
  %398 = vmatpush.msra.mxu0 %v310
  %399 = vmatpush.msra.mxu0 %v309
  %400 = vmatpush.msra.mxu0 %v308
  %401 = vmatpush.msra.mxu0 %v307
  %402 = vmatpush.msra.mxu0 %v306
  %403 = vmatmul.f32.gmra.mxu0 %v287
  %v404 = vpop.f32.mrf.mxu0
  %v405 = vadd.f32 %v385, %v404
  %406 = vdwg.mxu0
  %407 = vmatpush.msra.mxu0 %v337
  %408 = vmatpush.msra.mxu0 %v336
  %409 = vmatpush.msra.mxu0 %v335
  %410 = vmatpush.msra.mxu0 %v334
  %411 = vmatpush.msra.mxu0 %v333
  %412 = vmatpush.msra.mxu0 %v332
  %413 = vmatpush.msra.mxu0 %v331
  %414 = vmatpush.msra.mxu0 %v330
  %415 = vmatpush.msra.mxu0 %v329
  %416 = vmatpush.msra.mxu0 %v328
  %417 = vmatpush.msra.mxu0 %v327
  %418 = vmatpush.msra.mxu0 %v326
  %419 = vmatpush.msra.mxu0 %v325
  %420 = vmatpush.msra.mxu0 %v324
  %421 = vmatpush.msra.mxu0 %v323
  %422 = vmatpush.msra.mxu0 %v322
  %423 = vmatmul.f32.gmra.mxu0 %v288
  %v424 = vpop.f32.mrf.mxu0
  %v425 = vadd.f32 %v405, %v424
  %426 = vdwg.mxu0
  %427 = vmatpush.msra.mxu0 %v353
  %428 = vmatpush.msra.mxu0 %v352
  %429 = vmatpush.msra.mxu0 %v351
  %430 = vmatpush.msra.mxu0 %v350
  %431 = vmatpush.msra.mxu0 %v349
  %432 = vmatpush.msra.mxu0 %v348
  %433 = vmatpush.msra.mxu0 %v347
  %434 = vmatpush.msra.mxu0 %v346
  %435 = vmatpush.msra.mxu0 %v345
  %436 = vmatpush.msra.mxu0 %v344
  %437 = vmatpush.msra.mxu0 %v343
  %438 = vmatpush.msra.mxu0 %v342
  %439 = vmatpush.msra.mxu0 %v341
  %440 = vmatpush.msra.mxu0 %v340
  %441 = vmatpush.msra.mxu0 %v339
  %442 = vmatpush.msra.mxu0 %v338
  %443 = vmatmul.f32.gmra.mxu0 %v289
  %v444 = vpop.f32.mrf.mxu0
  %v445 = vadd.f32 %v425, %v444
  %446 = vdwg.mxu0
  %447 = vmatpush.msra.mxu0 0.0
  %448 = vmatpush.msra.mxu0 0.0
  %449 = vmatpush.msra.mxu0 0.0
  %450 = vmatpush.msra.mxu0 0.0
  %451 = vmatpush.msra.mxu0 0.0
  %452 = vmatpush.msra.mxu0 0.0
  %453 = vmatpush.msra.mxu0 0.0
  %454 = vmatpush.msra.mxu0 0.0
  %455 = vmatpush.msra.mxu0 %v361
  %456 = vmatpush.msra.mxu0 %v360
  %457 = vmatpush.msra.mxu0 %v359
  %458 = vmatpush.msra.mxu0 %v358
  %459 = vmatpush.msra.mxu0 %v357
  %460 = vmatpush.msra.mxu0 %v356
  %461 = vmatpush.msra.mxu0 %v355
  %462 = vmatpush.msra.mxu0 %v354
  %463 = vmatmul.f32.gmra.mxu0 %v365
  %v464 = vpop.f32.mrf.mxu0
  %v465 = vadd.f32 %v445, %v464
  %466 = vdwg.mxu0
  %v467 = vmax.f32 %v465, 0.0
  %v468 = vld [vmem:[%s1 + $0x291] sm:$0x1]
  %v469 = vld [vmem:[%s1 + $0x292] sm:$0x1]
  %v470 = vperm.slane %v468, 0
  %v471 = vmul.f32 %v467, %v470
  %v472 = vsel %vm189, %v471, 0.0
  %473 = vadd.xlane.f32.xlu0 %v472
  %v474 = vpop.xlane.xlu0 %473
  %v475 = vperm.slane %v469, 0
  %v476 = vadd.f32 %v474, %v475
  %vm477 = vcmask 7168
  %478 = vst.msk [vmem:[%s2] sm:$0xff] %vm477, %v476
  // Predicated region
  $region10: #{wine_cnn_forward.1} parent=0 // pred_check
    _
  $region11: #{wine_cnn_forward.1} parent=0 // pred_check_branch
    %480 = sbr.rel (0) target = $region13
  $region12: #{wine_cnn_forward.1} parent=0 // pred_region
    _
  $region13: #{wine_cnn_forward.1} parent=0 // pred_fallthru
    _
  // Predicated region
  $region14: #{wine_cnn_forward.1} parent=0 // pred_check
    _
  $region15: #{wine_cnn_forward.1} parent=0 // pred_check_branch
    %482 = sbr.rel (0) target = $region17
  $region16: #{wine_cnn_forward.1} parent=0 // pred_region
    _
  $region17: #{wine_cnn_forward.1} parent=0 // pred_fallthru
    _

</llo_original>
